<compile_context>
chip_gen: v6e
topology: v6e:2x2x1
jax: 0.10.0
libtpu: 0.0.40
codegen_flags: <defaults>
</compile_context>

<pallas_src>
import jax
import jax.numpy as jnp
from jax import lax
from jax.experimental import pallas as pl
from jax.experimental.pallas import tpu as pltpu


def _round_up(v, m):
    return (v + m - 1) // m * m


# ---------------------------------------------------------------------------
# Fast path: weights/bias VMEM-resident, grid over M tiles only.
# ---------------------------------------------------------------------------
def _kernel_resident(xr_ref, xi_ref, wr_ref, wi_ref, br_ref, bi_ref,
                     yr_ref, yi_ref):
    yr_ref[...] = br_ref[...] + jnp.dot(
        xr_ref[...], wr_ref[...], preferred_element_type=jnp.float32)
    yi_ref[...] = bi_ref[...] + jnp.dot(
        xi_ref[...], wi_ref[...], preferred_element_type=jnp.float32)


# ---------------------------------------------------------------------------
# General path: tiled matmul, K innermost, accumulate directly into the
# VMEM-resident output blocks (no scratch accumulator).
# ---------------------------------------------------------------------------
def _kernel_tiled(xr_ref, xi_ref, wr_ref, wi_ref, br_ref, bi_ref,
                  yr_ref, yi_ref):
    kk = pl.program_id(2)

    @pl.when(kk == 0)
    def _init():
        # Bias added exactly once, as the accumulator init.
        yr_ref[...] = jnp.broadcast_to(br_ref[...], yr_ref.shape)
        yi_ref[...] = jnp.broadcast_to(bi_ref[...], yi_ref.shape)

    yr_ref[...] += jnp.dot(xr_ref[...], wr_ref[...],
                           preferred_element_type=jnp.float32)
    yi_ref[...] += jnp.dot(xi_ref[...], wi_ref[...],
                           preferred_element_type=jnp.float32)


def complex_dense(x, w_real, b_real, w_imag, b_imag,
                  *, tm_max=512, tn_max=512, tk_max=512,
                  vmem_limit_bytes=32 * 1024 * 1024):
    """ComplexDense forward.

    x      : complex64, shape (..., C_in)
    w_*    : (C_out, C_in)  -- torch nn.Linear layout
    b_*    : (C_out,)
    returns: complex64, shape (..., C_out)
    """
    *lead, K = x.shape
    N = w_real.shape[0]
    M = 1
    for d in lead:
        M *= d

    # Single fused deinterleave pass; reshape of contiguous leading dims is free.
    xr = jnp.real(x).reshape(M, K).astype(jnp.float32)
    xi = jnp.imag(x).reshape(M, K).astype(jnp.float32)
    # Hoist the weight transpose into the wrapper (fuses into the one weight
    # copy we must make anyway); kernel then does a standard (tm,tk)@(tk,tn).
    wr = w_real.astype(jnp.float32).T          # (K, N)
    wi = w_imag.astype(jnp.float32).T          # (K, N)
    br = b_real.astype(jnp.float32).reshape(1, N)
    bi = b_imag.astype(jnp.float32).reshape(1, N)

    # M tile: full dim if it fits (always legal), else a multiple-of-8 tile.
    tm = M if M <= tm_max else tm_max

    # Conservative per-step VMEM estimate for the resident-weight path
    # (weights counted double-buffered even though they are fetched once).
    est_bytes = (2 * 2 * K * N        # weights (both planes)
                 + 2 * 2 * tm * K     # x tiles (both planes, double-buffered)
                 + 2 * 2 * tm * N     # y tiles
                 + 2 * 2 * N) * 4     # bias
    resident_ok = est_bytes <= (vmem_limit_bytes * 3) // 4

    out_shape = (jax.ShapeDtypeStruct((M, N), jnp.float32),
                 jax.ShapeDtypeStruct((M, N), jnp.float32))

    if resident_ok:
        # ---- fast path: weights resident, grid over M only -----------------
        grid = (pl.cdiv(M, tm),)
        yr, yi = pl.pallas_call(
            _kernel_resident,
            out_shape=out_shape,
            grid_spec=pltpu.PrefetchScalarGridSpec(
                num_scalar_prefetch=0,
                grid=grid,
                in_specs=[
                    pl.BlockSpec((tm, K), lambda i: (i, 0)),   # x real
                    pl.BlockSpec((tm, K), lambda i: (i, 0)),   # x imag
                    pl.BlockSpec((K, N), lambda i: (0, 0)),    # w real (resident)
                    pl.BlockSpec((K, N), lambda i: (0, 0)),    # w imag (resident)
                    pl.BlockSpec((1, N), lambda i: (0, 0)),    # b real
                    pl.BlockSpec((1, N), lambda i: (0, 0)),    # b imag
                ],
                out_specs=(pl.BlockSpec((tm, N), lambda i: (i, 0)),
                           pl.BlockSpec((tm, N), lambda i: (i, 0))),
            ),
            compiler_params=pltpu.CompilerParams(
                dimension_semantics=("parallel",),
                vmem_limit_bytes=vmem_limit_bytes,
            ),
        )(xr, xi, wr, wi, br, bi)
    else:
        # ---- general path: 3-D grid, zero-pad only the reduction dim -------
        tn = N if N <= tn_max else tn_max       # tn_max is a multiple of 128
        tk = K if K <= tk_max else tk_max       # tk_max is a multiple of 128
        Kp = _round_up(K, tk)
        if Kp != K:
            # K padding must be zeros (garbage along the reduction axis would
            # corrupt valid outputs); M/N edge blocks need no padding since
            # their out-of-bounds rows/cols are masked on store.
            xr = jnp.pad(xr, ((0, 0), (0, Kp - K)))
            xi = jnp.pad(xi, ((0, 0), (0, Kp - K)))
            wr = jnp.pad(wr, ((0, Kp - K), (0, 0)))
            wi = jnp.pad(wi, ((0, Kp - K), (0, 0)))

        grid = (pl.cdiv(M, tm), pl.cdiv(N, tn), Kp // tk)
        yr, yi = pl.pallas_call(
            _kernel_tiled,
            out_shape=out_shape,
            grid_spec=pltpu.PrefetchScalarGridSpec(
                num_scalar_prefetch=0,
                grid=grid,
                in_specs=[
                    pl.BlockSpec((tm, tk), lambda i, j, kk: (i, kk)),  # x real
                    pl.BlockSpec((tm, tk), lambda i, j, kk: (i, kk)),  # x imag
                    pl.BlockSpec((tk, tn), lambda i, j, kk: (kk, j)),  # w real
                    pl.BlockSpec((tk, tn), lambda i, j, kk: (kk, j)),  # w imag
                    pl.BlockSpec((1, tn), lambda i, j, kk: (0, j)),    # b real
                    pl.BlockSpec((1, tn), lambda i, j, kk: (0, j)),    # b imag
                ],
                out_specs=(pl.BlockSpec((tm, tn), lambda i, j, kk: (i, j)),
                           pl.BlockSpec((tm, tn), lambda i, j, kk: (i, j))),
            ),
            compiler_params=pltpu.CompilerParams(
                # M / N independent (megacore-shardable); K is the reduction
                # axis -> "arbitrary", kept innermost for the resident output.
                dimension_semantics=("parallel", "parallel", "arbitrary"),
                vmem_limit_bytes=vmem_limit_bytes,
            ),
        )(xr, xi, wr, wi, br, bi)

    # Single fused re-interleave pass; no slicing needed (outputs are exact size).
    out = lax.complex(yr, yi)
    return out.reshape(*lead, N)


def _reference(x, w_real, b_real, w_imag, b_imag):
    yr = jnp.real(x) @ w_real.T + b_real
    yi = jnp.imag(x) @ w_imag.T + b_imag
    return lax.complex(yr, yi)


if __name__ == "__main__":
    # Shapes implied by the module: Linear over last dim of a complex tensor.
    B, S, C_IN, C_OUT = 2, 8, 32, 32

    key = jax.random.PRNGKey(0)
    k1, k2, k3, k4, k5, k6 = jax.random.split(key, 6)

    # Deterministic synthetic parameters (torch.nn.Linear-style uniform bound).
    bound = 1.0 / jnp.sqrt(jnp.float32(C_IN))
    w_real = jax.random.uniform(k1, (C_OUT, C_IN), jnp.float32, -bound, bound)
    b_real = jax.random.uniform(k2, (C_OUT,), jnp.float32, -bound, bound)
    w_imag = jax.random.uniform(k3, (C_OUT, C_IN), jnp.float32, -bound, bound)
    b_imag = jax.random.uniform(k4, (C_OUT,), jnp.float32, -bound, bound)

    x_real = jax.random.normal(k5, (B, S, C_IN), jnp.float32)
    x_imag = jax.random.normal(k6, (B, S, C_IN), jnp.float32)
    x = lax.complex(x_real, x_imag)  # complex64, shape (B, S, C_IN)

    y = jax.block_until_ready(complex_dense(x, w_real, b_real, w_imag, b_imag))

    y_ref = _reference(x, w_real, b_real, w_imag, b_imag)
    assert y.shape == (B, S, C_OUT) and y.dtype == jnp.complex64
    assert jnp.allclose(y, y_ref, atol=1e-5, rtol=1e-5)

    print("KERNEL_OK")
</pallas_src>

<mosaic_0001>
module attributes {stable_mosaic.version = 11 : i64} {
  func.func @_kernel_resident(%arg0: i32, %arg1: memref<16x32xf32, #tpu.memory_space<vmem>>, %arg2: memref<16x32xf32, #tpu.memory_space<vmem>>, %arg3: memref<32x32xf32, #tpu.memory_space<vmem>>, %arg4: memref<32x32xf32, #tpu.memory_space<vmem>>, %arg5: memref<1x32xf32, #tpu.memory_space<vmem>>, %arg6: memref<1x32xf32, #tpu.memory_space<vmem>>, %arg7: memref<16x32xf32, #tpu.memory_space<vmem>>, %arg8: memref<16x32xf32, #tpu.memory_space<vmem>>) attributes {dimension_semantics = [#tpu.dimension_semantics<parallel>], iteration_bounds = array<i64: 1>, scalar_prefetch = 0 : i64, scratch_operands = 0 : i64, tpu.core_type = #tpu.core_type<tc>, window_params = [{transform_indices = @transform_0, window_bounds = array<i64: 16, 32>}, {transform_indices = @transform_1, window_bounds = array<i64: 16, 32>}, {pipeline_mode = #tpu.pipeline_mode<synchronous>, transform_indices = @transform_2, window_bounds = array<i64: 32, 32>}, {pipeline_mode = #tpu.pipeline_mode<synchronous>, transform_indices = @transform_3, window_bounds = array<i64: 32, 32>}, {pipeline_mode = #tpu.pipeline_mode<synchronous>, transform_indices = @transform_4, window_bounds = array<i64: 1, 32>}, {pipeline_mode = #tpu.pipeline_mode<synchronous>, transform_indices = @transform_5, window_bounds = array<i64: 1, 32>}, {transform_indices = @transform_6, window_bounds = array<i64: 16, 32>}, {transform_indices = @transform_7, window_bounds = array<i64: 16, 32>}]} {
    %c0 = arith.constant 0 : index
    %c0_0 = arith.constant 0 : index
    %0 = vector.load %arg5[%c0, %c0_0] : memref<1x32xf32, #tpu.memory_space<vmem>>, vector<1x32xf32>
    %c0_1 = arith.constant 0 : index
    %c0_2 = arith.constant 0 : index
    %1 = vector.load %arg1[%c0_1, %c0_2] : memref<16x32xf32, #tpu.memory_space<vmem>>, vector<16x32xf32>
    %c0_3 = arith.constant 0 : index
    %c0_4 = arith.constant 0 : index
    %2 = vector.load %arg3[%c0_3, %c0_4] : memref<32x32xf32, #tpu.memory_space<vmem>>, vector<32x32xf32>
    %cst = arith.constant dense<0.000000e+00> : vector<16x32xf32>
    %3 = tpu.matmul %1, %2, %cst {dimension_numbers = #tpu.dot_dimension_numbers<[1], [0], [0], [1], [0, 0, 1, 1], [], []>} : vector<16x32xf32>, vector<32x32xf32>, vector<16x32xf32> -> vector<16x32xf32>
    %4 = vector.broadcast %0 : vector<1x32xf32> to vector<16x32xf32>
    %5 = arith.addf %4, %3 : vector<16x32xf32>
    %c0_5 = arith.constant 0 : index
    %c0_6 = arith.constant 0 : index
    %6 = vector.load %arg7[%c0_5, %c0_6] : memref<16x32xf32, #tpu.memory_space<vmem>>, vector<16x32xf32>
    tpu.vector_store %arg7[%c0_5, %c0_6], %5 {strides = array<i32>} : memref<16x32xf32, #tpu.memory_space<vmem>>, vector<16x32xf32>,
    %c0_7 = arith.constant 0 : index
    %c0_8 = arith.constant 0 : index
    %7 = vector.load %arg6[%c0_7, %c0_8] : memref<1x32xf32, #tpu.memory_space<vmem>>, vector<1x32xf32>
    %c0_9 = arith.constant 0 : index
    %c0_10 = arith.constant 0 : index
    %8 = vector.load %arg2[%c0_9, %c0_10] : memref<16x32xf32, #tpu.memory_space<vmem>>, vector<16x32xf32>
    %c0_11 = arith.constant 0 : index
    %c0_12 = arith.constant 0 : index
    %9 = vector.load %arg4[%c0_11, %c0_12] : memref<32x32xf32, #tpu.memory_space<vmem>>, vector<32x32xf32>
    %cst_13 = arith.constant dense<0.000000e+00> : vector<16x32xf32>
    %10 = tpu.matmul %8, %9, %cst_13 {dimension_numbers = #tpu.dot_dimension_numbers<[1], [0], [0], [1], [0, 0, 1, 1], [], []>} : vector<16x32xf32>, vector<32x32xf32>, vector<16x32xf32> -> vector<16x32xf32>
    %11 = vector.broadcast %7 : vector<1x32xf32> to vector<16x32xf32>
    %12 = arith.addf %11, %10 : vector<16x32xf32>
    %c0_14 = arith.constant 0 : index
    %c0_15 = arith.constant 0 : index
    %13 = vector.load %arg8[%c0_14, %c0_15] : memref<16x32xf32, #tpu.memory_space<vmem>>, vector<16x32xf32>
    tpu.vector_store %arg8[%c0_14, %c0_15], %12 {strides = array<i32>} : memref<16x32xf32, #tpu.memory_space<vmem>>, vector<16x32xf32>,
    return
  }
  func.func @transform_0(%arg0: i32) -> (i32, i32) {
    %c0_i32 = arith.constant 0 : i32
    %c0_i32_0 = arith.constant 0 : i32
    return %arg0, %c0_i32 : i32, i32
  }
  func.func @transform_1(%arg0: i32) -> (i32, i32) {
    %c0_i32 = arith.constant 0 : i32
    %c0_i32_0 = arith.constant 0 : i32
    return %arg0, %c0_i32 : i32, i32
  }
  func.func @transform_2(%arg0: i32) -> (i32, i32) {
    %c0_i32 = arith.constant 0 : i32
    %c0_i32_0 = arith.constant 0 : i32
    %c0_i32_1 = arith.constant 0 : i32
    return %c0_i32, %c0_i32_0 : i32, i32
  }
  func.func @transform_3(%arg0: i32) -> (i32, i32) {
    %c0_i32 = arith.constant 0 : i32
    %c0_i32_0 = arith.constant 0 : i32
    %c0_i32_1 = arith.constant 0 : i32
    return %c0_i32, %c0_i32_0 : i32, i32
  }
  func.func @transform_4(%arg0: i32) -> (i32, i32) {
    %c0_i32 = arith.constant 0 : i32
    %c0_i32_0 = arith.constant 0 : i32
    %c0_i32_1 = arith.constant 0 : i32
    return %c0_i32, %c0_i32_0 : i32, i32
  }
  func.func @transform_5(%arg0: i32) -> (i32, i32) {
    %c0_i32 = arith.constant 0 : i32
    %c0_i32_0 = arith.constant 0 : i32
    %c0_i32_1 = arith.constant 0 : i32
    return %c0_i32, %c0_i32_0 : i32, i32
  }
  func.func @transform_6(%arg0: i32) -> (i32, i32) {
    %c0_i32 = arith.constant 0 : i32
    %c0_i32_0 = arith.constant 0 : i32
    return %arg0, %c0_i32 : i32, i32
  }
  func.func @transform_7(%arg0: i32) -> (i32, i32) {
    %c0_i32 = arith.constant 0 : i32
    %c0_i32_0 = arith.constant 0 : i32
    return %arg0, %c0_i32 : i32, i32
  }
}

</mosaic_0001>

<llo_original>
// kernel: tpu_custom_call.1
$region0: #{tpu_custom_call.1}
  #allocation0 [shape = 'u32[]', space=smem, size = 0x4, offset = 0x4, fixed_abs, tag = 'smem constant byte address 0x4 - core index']
  #allocation1 [shape = 'u32[144,128]{1,0:T(1,128)}', space=vmem, size = 0x12000, scoped, tag = 'internal scratch']
  %s0 = inlined_call_operand.hbm [shape: f32[16,32], index: 0, kind: input, shape index: {}]
  %s1 = inlined_call_operand.hbm [shape: f32[16,32], index: 1, kind: input, shape index: {}]
  %s2 = inlined_call_operand.hbm [shape: f32[32,32], index: 2, kind: input, shape index: {}]
  %s3 = inlined_call_operand.hbm [shape: f32[32,32], index: 3, kind: input, shape index: {}]
  %s4 = inlined_call_operand.vmem [shape: f32[1,32], index: 4, kind: input, shape index: {}]
  %s5 = inlined_call_operand.vmem [shape: f32[1,32], index: 5, kind: input, shape index: {}]
  %s6 = inlined_call_operand.hbm [shape: f32[16,32], index: 6, kind: output, shape index: {0}]
  %s7 = inlined_call_operand.hbm [shape: f32[16,32], index: 7, kind: output, shape index: {1}]
  %8 = xla_tuple %s6, %s7
  %s9 = sld [smem:[#allocation0]]
  $region58: #{tpu_custom_call.1} parent=0
    _
  %s11 = ssub.s32 1, %s9
  %s12 = scalar_select 0, %s11, %s9
  $region1: #{tpu_custom_call.1} parent=0
    #allocation2 [shape = 'u8[8192]{0}', space=vmem, size = 0x2000, scoped, tag = 'input window, operand 0, single buffered']
    #allocation3 [shape = 's32[1]{0}', space=sflag, size = 0x4, scoped, tag = 'scoped memory for tpu_custom_call.1']
    #allocation4 [shape = 's32[1]{0}', space=sflag, size = 0x4, scoped, tag = 'scoped memory for tpu_custom_call.1']
    #allocation5 [shape = 'u8[8192]{0}', space=vmem, size = 0x2000, scoped, tag = 'input window, operand 1, single buffered']
    #allocation6 [shape = 's32[1]{0}', space=sflag, size = 0x4, scoped, tag = 'scoped memory for tpu_custom_call.1']
    #allocation7 [shape = 'u8[16384]{0}', space=vmem, size = 0x4000, scoped, tag = 'input window, operand 2, single buffered']
    #allocation8 [shape = 'u8[16384]{0}', space=vmem, size = 0x4000, scoped, tag = 'input window, operand 3, single buffered']
    #allocation9 [shape = 's32[1]{0}', space=sflag, size = 0x4, scoped, tag = 'scoped memory for tpu_custom_call.1']
    #allocation10 [shape = 'u8[8192]{0}', space=vmem, size = 0x2000, scoped, tag = 'output window, operand 0, single buffered']
    #allocation11 [shape = 'u8[8192]{0}', space=vmem, size = 0x2000, scoped, tag = 'output window, operand 1, single buffered']
    #allocation12 [shape = 's32[1]{0}', space=sflag, size = 0x4, scoped, tag = 'scoped memory for tpu_custom_call.1']
    %13 = vsyncpa [#allocation3], 0
    %14 = vsyncpa [#allocation6], 0
    %15 = vsyncpa [#allocation9], 0
    %16 = vsyncpa [#allocation4], 0
    %17 = vsyncpa [#allocation12], 0
    // Predicated region
    $region2: #{tpu_custom_call.1} parent=1 // pred_check
      _
    $region3: #{tpu_custom_call.1} parent=1 // pred_check_branch
      %19 = sbr.rel (0) target = $region5
    $region4: #{tpu_custom_call.1} parent=1 // pred_region
      %s21 = ssub.s32 256, 256
      %22 = vsyncadd [#allocation3], %s21
      %s23 = sshll.u32 [#allocation2], 4
      %s24 = int_to_ptr.vmem [resolvable:$true] %s23
      %29 = dma.hbm_to_vmem [thread:$0]  %s0, 256, %s24, [#allocation3], 128, 128, 8
    $region5: #{tpu_custom_call.1} parent=1 // pred_fallthru
      _
    // Predicated region
    $region6: #{tpu_custom_call.1} parent=1 // pred_check
      _
    $region7: #{tpu_custom_call.1} parent=1 // pred_check_branch
      %31 = sbr.rel (0) target = $region9
    $region8: #{tpu_custom_call.1} parent=1 // pred_region
      %s33 = ssub.s32 256, 256
      %34 = vsyncadd [#allocation6], %s33
      %s35 = sshll.u32 [#allocation5], 4
      %s36 = int_to_ptr.vmem [resolvable:$true] %s35
      %41 = dma.hbm_to_vmem [thread:$0]  %s1, 256, %s36, [#allocation6], 128, 128, 8
    $region9: #{tpu_custom_call.1} parent=1 // pred_fallthru
      _
    // Predicated region
    $region10: #{tpu_custom_call.1} parent=1 // pred_check
      _
    $region11: #{tpu_custom_call.1} parent=1 // pred_check_branch
      %43 = sbr.rel (0) target = $region13
    $region12: #{tpu_custom_call.1} parent=1 // pred_region
      %s45 = ssub.s32 512, 512
      %46 = vsyncadd [#allocation6], %s45
      %s47 = sshll.u32 [#allocation7], 4
      %s48 = int_to_ptr.vmem [resolvable:$true] %s47
      %53 = dma.hbm_to_vmem [thread:$0]  %s2, 512, %s48, [#allocation6], 128, 128, 8
    $region13: #{tpu_custom_call.1} parent=1 // pred_fallthru
      _
    // Predicated region
    $region14: #{tpu_custom_call.1} parent=1 // pred_check
      _
    $region15: #{tpu_custom_call.1} parent=1 // pred_check_branch
      %55 = sbr.rel (0) target = $region17
    $region16: #{tpu_custom_call.1} parent=1 // pred_region
      %s57 = ssub.s32 512, 512
      %58 = vsyncadd [#allocation9], %s57
      %s59 = sshll.u32 [#allocation8], 4
      %s60 = int_to_ptr.vmem [resolvable:$true] %s59
      %65 = dma.hbm_to_vmem [thread:$0]  %s3, 512, %s60, [#allocation9], 128, 128, 8
    $region17: #{tpu_custom_call.1} parent=1 // pred_fallthru
      _
    // Predicated region
    $region18: #{tpu_custom_call.1} parent=1 // pred_check
      _
    $region19: #{tpu_custom_call.1} parent=1 // pred_check_branch
      %67 = sbr.rel (0) target = $region21
    $region20: #{tpu_custom_call.1} parent=1 // pred_region
      _
    $region21: #{tpu_custom_call.1} parent=1 // pred_fallthru
      _
    // Predicated region
    $region22: #{tpu_custom_call.1} parent=1 // pred_check
      _
    $region23: #{tpu_custom_call.1} parent=1 // pred_check_branch
      %69 = sbr.rel (0) target = $region25
    $region24: #{tpu_custom_call.1} parent=1 // pred_region
      _
    $region25: #{tpu_custom_call.1} parent=1 // pred_fallthru
      _
    // Predicated region
    $region26: #{tpu_custom_call.1} parent=1 // pred_check
      _
    $region27: #{tpu_custom_call.1} parent=1 // pred_check_branch
      %71 = sbr.rel (0) target = $region29
    $region28: #{tpu_custom_call.1} parent=1 // pred_region
      %72 = dma.done [#allocation3], 256
    $region29: #{tpu_custom_call.1} parent=1 // pred_fallthru
      _
    // Predicated region
    $region30: #{tpu_custom_call.1} parent=1 // pred_check
      _
    $region31: #{tpu_custom_call.1} parent=1 // pred_check_branch
      %74 = sbr.rel (0) target = $region33
    $region32: #{tpu_custom_call.1} parent=1 // pred_region
      %75 = dma.done [#allocation6], 256
    $region33: #{tpu_custom_call.1} parent=1 // pred_fallthru
      _
    // Predicated region
    $region34: #{tpu_custom_call.1} parent=1 // pred_check
      _
    $region35: #{tpu_custom_call.1} parent=1 // pred_check_branch
      %77 = sbr.rel (0) target = $region37
    $region36: #{tpu_custom_call.1} parent=1 // pred_region
      %78 = dma.done [#allocation6], 512
    $region37: #{tpu_custom_call.1} parent=1 // pred_fallthru
      _
    // Predicated region
    $region38: #{tpu_custom_call.1} parent=1 // pred_check
      _
    $region39: #{tpu_custom_call.1} parent=1 // pred_check_branch
      %80 = sbr.rel (0) target = $region41
    $region40: #{tpu_custom_call.1} parent=1 // pred_region
      %81 = dma.done [#allocation9], 512
    $region41: #{tpu_custom_call.1} parent=1 // pred_fallthru
      _
    %v82 = vld [vmem:[%s4] sm:$0x1]
    %v83 = vld [vmem:[#allocation2] sm:$0xff]
    %v84 = vld [vmem:[#allocation2 + $0x8] sm:$0xff]
    %v85 = vld [vmem:[#allocation7] sm:$0xff]
    %v86 = vld [vmem:[#allocation7 + $0x8] sm:$0xff]
    %v87 = vld [vmem:[#allocation7 + $0x10] sm:$0xff]
    %v88 = vld [vmem:[#allocation7 + $0x18] sm:$0xff]
    %vm89 = vcmask 261120
    %v91 = vsel %vm89, %v83, 0
    %v94 = vsel %vm89, %v84, 0
    %96 = vmatprep.subr.mxu0 0.0
    %97 = vmatpush1.msra.mxu0 0.0
    %98 = vmatprep.subr.mxu0 0.0
    %99 = vmatpush1.msra.mxu0 0.0
    %100 = vmatprep.subr.mxu0 0.0
    %101 = vmatpush1.msra.mxu0 0.0
    %102 = vmatprep.subr.mxu0 0.0
    %103 = vmatpush1.msra.mxu0 0.0
    %104 = vmatprep.subr.mxu0 0.0
    %105 = vmatpush1.msra.mxu0 0.0
    %106 = vmatprep.subr.mxu0 0.0
    %107 = vmatpush1.msra.mxu0 0.0
    %108 = vmatprep.subr.mxu0 0.0
    %109 = vmatpush1.msra.mxu0 0.0
    %110 = vmatprep.subr.mxu0 0.0
    %111 = vmatpush1.msra.mxu0 0.0
    %112 = vmatprep.subr.mxu0 0.0
    %113 = vmatpush1.msra.mxu0 0.0
    %114 = vmatprep.subr.mxu0 0.0
    %115 = vmatpush1.msra.mxu0 0.0
    %116 = vmatprep.subr.mxu0 0.0
    %117 = vmatpush1.msra.mxu0 0.0
    %118 = vmatprep.subr.mxu0 0.0
    %119 = vmatpush1.msra.mxu0 0.0
    %120 = vmatprep.subr.mxu0 0.0
    %121 = vmatpush1.msra.mxu0 %v88
    %122 = vmatprep.subr.mxu0 0.0
    %123 = vmatpush1.msra.mxu0 %v87
    %124 = vmatprep.subr.mxu0 0.0
    %125 = vmatpush1.msra.mxu0 %v86
    %126 = vmatprep.subr.mxu0 0.0
    %127 = vmatpush1.msra.mxu0 %v85
    %128 = vmatprep.subr.mxu0 0.0
    %129 = vmatpush2.msra.mxu0 0.0
    %130 = vmatprep.subr.mxu0 0.0
    %131 = vmatpush2.msra.mxu0 0.0
    %132 = vmatprep.subr.mxu0 0.0
    %133 = vmatpush2.msra.mxu0 0.0
    %134 = vmatprep.subr.mxu0 0.0
    %135 = vmatpush2.msra.mxu0 0.0
    %136 = vmatprep.subr.mxu0 0.0
    %137 = vmatpush2.msra.mxu0 0.0
    %138 = vmatprep.subr.mxu0 0.0
    %139 = vmatpush2.msra.mxu0 0.0
    %140 = vmatprep.subr.mxu0 0.0
    %141 = vmatpush2.msra.mxu0 0.0
    %142 = vmatprep.subr.mxu0 0.0
    %143 = vmatpush2.msra.mxu0 0.0
    %144 = vmatprep.subr.mxu0 0.0
    %145 = vmatpush2.msra.mxu0 0.0
    %146 = vmatprep.subr.mxu0 0.0
    %147 = vmatpush2.msra.mxu0 0.0
    %148 = vmatprep.subr.mxu0 0.0
    %149 = vmatpush2.msra.mxu0 0.0
    %150 = vmatprep.subr.mxu0 0.0
    %151 = vmatpush2.msra.mxu0 0.0
    %152 = vmatprep.subr.mxu0 0.0
    %153 = vmatpush2.msra.mxu0 0.0
    %154 = vmatprep.subr.mxu0 0.0
    %155 = vmatpush2.msra.mxu0 0.0
    %156 = vmatprep.subr.mxu0 0.0
    %157 = vmatpush2.msra.mxu0 0.0
    %158 = vmatprep.subr.mxu0 0.0
    %159 = vmatpush2.msra.mxu0 0.0
    %160 = vmatprep.mubr.f32.mxu0 0.0
    %161 = vmatmul.mubr.f32.gmra.mxu0 %v91
    %v162 = vpop.f32.mrf.mxu0
    %v163 = vadd.f32 0.0, %v162
    %v164 = vpop.f32.mrf.mxu0
    %165 = vmatprep.mubr.f32.mxu0 0.0
    %166 = vmatmul.mubr.f32.gmra.mxu0 %v94
    %v167 = vpop.f32.mrf.mxu0
    %v168 = vadd.f32 0.0, %v167
    %v169 = vpop.f32.mrf.mxu0
    %170 = vdwg.mxu0
    %v172 = vlaneseq
    %v173 = vshrl.u32 %v172, 7
    %v174 = vsub.s32 0, %v173
    %v175 = vrot.slane %v82, %v174
    %v177 = vadd.f32 %v175, %v163
    %v178 = vadd.f32 %v175, %v168
    %179 = vst.msk [vmem:[#allocation10] sm:$0xff] %vm89, %v177
    %180 = vst.msk [vmem:[#allocation10 + $0x8] sm:$0xff] %vm89, %v178
    %v181 = vld [vmem:[%s5] sm:$0x1]
    %v182 = vld [vmem:[#allocation5] sm:$0xff]
    %v183 = vld [vmem:[#allocation5 + $0x8] sm:$0xff]
    %v184 = vld [vmem:[#allocation8] sm:$0xff]
    %v185 = vld [vmem:[#allocation8 + $0x8] sm:$0xff]
    %v186 = vld [vmem:[#allocation8 + $0x10] sm:$0xff]
    %v187 = vld [vmem:[#allocation8 + $0x18] sm:$0xff]
    %v189 = vsel %vm89, %v182, 0
    %v192 = vsel %vm89, %v183, 0
    %194 = vmatprep.subr.mxu0 0.0
    %195 = vmatpush1.msra.mxu0 0.0
    %196 = vmatprep.subr.mxu0 0.0
    %197 = vmatpush1.msra.mxu0 0.0
    %198 = vmatprep.subr.mxu0 0.0
    %199 = vmatpush1.msra.mxu0 0.0
    %200 = vmatprep.subr.mxu0 0.0
    %201 = vmatpush1.msra.mxu0 0.0
    %202 = vmatprep.subr.mxu0 0.0
    %203 = vmatpush1.msra.mxu0 0.0
    %204 = vmatprep.subr.mxu0 0.0
    %205 = vmatpush1.msra.mxu0 0.0
    %206 = vmatprep.subr.mxu0 0.0
    %207 = vmatpush1.msra.mxu0 0.0
    %208 = vmatprep.subr.mxu0 0.0
    %209 = vmatpush1.msra.mxu0 0.0
    %210 = vmatprep.subr.mxu0 0.0
    %211 = vmatpush1.msra.mxu0 0.0
    %212 = vmatprep.subr.mxu0 0.0
    %213 = vmatpush1.msra.mxu0 0.0
    %214 = vmatprep.subr.mxu0 0.0
    %215 = vmatpush1.msra.mxu0 0.0
    %216 = vmatprep.subr.mxu0 0.0
    %217 = vmatpush1.msra.mxu0 0.0
    %218 = vmatprep.subr.mxu0 0.0
    %219 = vmatpush1.msra.mxu0 %v187
    %220 = vmatprep.subr.mxu0 0.0
    %221 = vmatpush1.msra.mxu0 %v186
    %222 = vmatprep.subr.mxu0 0.0
    %223 = vmatpush1.msra.mxu0 %v185
    %224 = vmatprep.subr.mxu0 0.0
    %225 = vmatpush1.msra.mxu0 %v184
    %226 = vmatprep.subr.mxu0 0.0
    %227 = vmatpush2.msra.mxu0 0.0
    %228 = vmatprep.subr.mxu0 0.0
    %229 = vmatpush2.msra.mxu0 0.0
    %230 = vmatprep.subr.mxu0 0.0
    %231 = vmatpush2.msra.mxu0 0.0
    %232 = vmatprep.subr.mxu0 0.0
    %233 = vmatpush2.msra.mxu0 0.0
    %234 = vmatprep.subr.mxu0 0.0
    %235 = vmatpush2.msra.mxu0 0.0
    %236 = vmatprep.subr.mxu0 0.0
    %237 = vmatpush2.msra.mxu0 0.0
    %238 = vmatprep.subr.mxu0 0.0
    %239 = vmatpush2.msra.mxu0 0.0
    %240 = vmatprep.subr.mxu0 0.0
    %241 = vmatpush2.msra.mxu0 0.0
    %242 = vmatprep.subr.mxu0 0.0
    %243 = vmatpush2.msra.mxu0 0.0
    %244 = vmatprep.subr.mxu0 0.0
    %245 = vmatpush2.msra.mxu0 0.0
    %246 = vmatprep.subr.mxu0 0.0
    %247 = vmatpush2.msra.mxu0 0.0
    %248 = vmatprep.subr.mxu0 0.0
    %249 = vmatpush2.msra.mxu0 0.0
    %250 = vmatprep.subr.mxu0 0.0
    %251 = vmatpush2.msra.mxu0 0.0
    %252 = vmatprep.subr.mxu0 0.0
    %253 = vmatpush2.msra.mxu0 0.0
    %254 = vmatprep.subr.mxu0 0.0
    %255 = vmatpush2.msra.mxu0 0.0
    %256 = vmatprep.subr.mxu0 0.0
    %257 = vmatpush2.msra.mxu0 0.0
    %258 = vmatprep.mubr.f32.mxu0 0.0
    %259 = vmatmul.mubr.f32.gmra.mxu0 %v189
    %v260 = vpop.f32.mrf.mxu0
    %v261 = vadd.f32 0.0, %v260
    %v262 = vpop.f32.mrf.mxu0
    %263 = vmatprep.mubr.f32.mxu0 0.0
    %264 = vmatmul.mubr.f32.gmra.mxu0 %v192
    %v265 = vpop.f32.mrf.mxu0
    %v266 = vadd.f32 0.0, %v265
    %v267 = vpop.f32.mrf.mxu0
    %268 = vdwg.mxu0
    %v270 = vlaneseq
    %v271 = vshrl.u32 %v270, 7
    %v272 = vsub.s32 0, %v271
    %v273 = vrot.slane %v181, %v272
    %v275 = vadd.f32 %v273, %v261
    %v276 = vadd.f32 %v273, %v266
    %277 = vst.msk [vmem:[#allocation11] sm:$0xff] %vm89, %v275
    %278 = vst.msk [vmem:[#allocation11 + $0x8] sm:$0xff] %vm89, %v276
    // Predicated region
    $region42: #{tpu_custom_call.1} parent=1 // pred_check
      _
    $region43: #{tpu_custom_call.1} parent=1 // pred_check_branch
      %280 = sbr.rel (0) target = $region45
    $region44: #{tpu_custom_call.1} parent=1 // pred_region
      %s282 = ssub.s32 256, 256
      %283 = vsyncadd [#allocation4], %s282
      %s284 = sshll.u32 [#allocation10], 4
      %s285 = int_to_ptr.vmem [resolvable:$true] %s284
      %290 = dma.vmem_to_hbm [thread:$0]  %s285, 256, %s6, [#allocation4], 128, 128, 8
    $region45: #{tpu_custom_call.1} parent=1 // pred_fallthru
      _
    // Predicated region
    $region46: #{tpu_custom_call.1} parent=1 // pred_check
      _
    $region47: #{tpu_custom_call.1} parent=1 // pred_check_branch
      %292 = sbr.rel (0) target = $region49
    $region48: #{tpu_custom_call.1} parent=1 // pred_region
      %s294 = ssub.s32 256, 256
      %295 = vsyncadd [#allocation12], %s294
      %s296 = sshll.u32 [#allocation11], 4
      %s297 = int_to_ptr.vmem [resolvable:$true] %s296
      %302 = dma.vmem_to_hbm [thread:$0]  %s297, 256, %s7, [#allocation12], 128, 128, 8
    $region49: #{tpu_custom_call.1} parent=1 // pred_fallthru
      _
    // Predicated region
    $region50: #{tpu_custom_call.1} parent=1 // pred_check
      _
    $region51: #{tpu_custom_call.1} parent=1 // pred_check_branch
      %304 = sbr.rel (0) target = $region53
    $region52: #{tpu_custom_call.1} parent=1 // pred_region
      %305 = dma.done [#allocation4], 256
    $region53: #{tpu_custom_call.1} parent=1 // pred_fallthru
      _
    // Predicated region
    $region54: #{tpu_custom_call.1} parent=1 // pred_check
      _
    $region55: #{tpu_custom_call.1} parent=1 // pred_check_branch
      %307 = sbr.rel (0) target = $region57
    $region56: #{tpu_custom_call.1} parent=1 // pred_region
      %308 = dma.done [#allocation12], 256
    $region57: #{tpu_custom_call.1} parent=1 // pred_fallthru
      _
    %309 = vsyncpa [#allocation3], 1
    %310 = vsyncpa [#allocation6], 1
    %311 = vsyncpa [#allocation9], 1
    %312 = vsyncpa [#allocation4], 1
    %313 = vsyncpa [#allocation12], 1

</llo_original>
